<compile_context>
chip_gen: v7x
topology: tpu7x:2x2x1
jax: 0.10.0
libtpu: 0.0.40
codegen_flags: <defaults>
</compile_context>

<pallas_src>
import functools

import jax
import jax.numpy as jnp
from jax.experimental import pallas as pl
from jax.experimental.pallas import tpu as pltpu

_LANES = 128
_SUBLANES = 8


def _round_up(x, m):
    return ((x + m - 1) // m) * m


def _partial_sums_kernel(p_ref, l_ref, out_ref, *, block_rows, bpc,
                         num_blocks, r_valid, needs_mask, has_dummy):
    c = pl.program_id(0)          # split (core) index
    i = pl.program_id(1)          # step within this split
    gb = c * bpc + i              # global block index along the row axis

    @pl.when(i == 0)
    def _init():
        out_ref[...] = jnp.zeros_like(out_ref)

    def _accum(mask_tail):
        p = p_ref[...].astype(jnp.float32)
        l = l_ref[...].astype(jnp.float32)
        if mask_tail:
            # Zero rows past the end of the (R,128) view: those rows are
            # Pallas block-padding of the ragged last block (undefined).
            row = (jax.lax.broadcasted_iota(jnp.int32, p.shape, 0)
                   + gb * block_rows)
            valid = row < r_valid
            p = jnp.where(valid, p, 0.0)
            l = jnp.where(valid, l, 0.0)
        diff = p - l

        def _part(x):
            # (block_rows, 128) -> (8, 128): tile-aligned reshape then pure
            # cross-vreg VPU adds (no XLU in the hot loop).
            return jnp.sum(x.reshape(-1, _SUBLANES, _LANES), axis=0)

        out_ref[0, 0] += _part(p * p)          # ||p||^2   lane partials
        out_ref[0, 1] += _part(l * l)          # ||l||^2   lane partials
        out_ref[0, 2] += _part(diff * diff)    # sum(p-l)^2 lane partials
        out_ref[0, 3] += _part(jnp.abs(diff))  # sum|p-l|   lane partials

    if needs_mask:
        @pl.when(gb < num_blocks - 1)
        def _hot():
            _accum(False)

        @pl.when(gb == num_blocks - 1)
        def _tail():
            _accum(True)
        # gb >= num_blocks (dummy overhang block): skipped entirely.
    elif has_dummy:
        @pl.when(gb < num_blocks)
        def _hot():
            _accum(False)
    else:
        _accum(False)


def custom_loss(predicted_scores, labels, alpha, beta, gamma, *,
                block_rows=4096):
    """Pallas implementation of CustomLoss.forward. Returns a scalar f32."""
    p = jnp.reshape(predicted_scores, (-1,))
    l = jnp.reshape(labels, (-1,))
    assert p.shape == l.shape, "predicted_scores and labels must have equal numel"
    n = int(p.shape[0])

    # Lane alignment: pad only to a 128 multiple (<=127 zeros); zeros add 0 to
    # every partial sum.  No pad at all when n % 128 == 0.
    # TODO(synk): replace with 1-D operands + in-kernel flat-index masking to
    # avoid the HBM copy in the ragged case.
    n_pad = _round_up(n, _LANES)
    if n_pad != n:
        p = jnp.pad(p, (0, n_pad - n))
        l = jnp.pad(l, (0, n_pad - n))
    r = n_pad // _LANES
    p2d = p.reshape(r, _LANES)
    l2d = l.reshape(r, _LANES)

    # dtype-native sublane tile: 8 (f32) / 16 (bf16) / 32 (int8/fp8).
    itemsize = min(p2d.dtype.itemsize, l2d.dtype.itemsize)
    sub_tile = max(_SUBLANES, 32 // max(1, itemsize))

    block_rows = max(sub_tile, min(int(block_rows), 8192))
    block_rows = _round_up(min(block_rows, r), sub_tile)
    num_blocks = int(pl.cdiv(r, block_rows))
    needs_mask = (r % block_rows) != 0

    # 2-way row split (v7x: one half per TensorCore; 1-TC chips: serial loop).
    num_splits = 2 if num_blocks >= 4 else 1
    bpc = int(pl.cdiv(num_blocks, num_splits))
    has_dummy = (bpc * num_splits) != num_blocks

    if has_dummy:
        def idx_map(c, i):
            return (jnp.minimum(c * bpc + i, num_blocks - 1), 0)
    else:
        def idx_map(c, i):
            return (c * bpc + i, 0)

    kernel = functools.partial(
        _partial_sums_kernel, block_rows=block_rows, bpc=bpc,
        num_blocks=num_blocks, r_valid=r, needs_mask=bool(needs_mask),
        has_dummy=bool(has_dummy))

    out_bytes = num_splits * 4 * _SUBLANES * _LANES * 4
    cost = pl.CostEstimate(
        flops=9 * n, transcendentals=0,
        bytes_accessed=int(p2d.nbytes) + int(l2d.nbytes) + out_bytes)

    parts = pl.pallas_call(
        kernel,
        out_shape=jax.ShapeDtypeStruct((num_splits, 4, _SUBLANES, _LANES),
                                       jnp.float32),
        grid=(num_splits, bpc),
        in_specs=[
            pl.BlockSpec((block_rows, _LANES), idx_map),
            pl.BlockSpec((block_rows, _LANES), idx_map),
        ],
        out_specs=pl.BlockSpec((1, 4, _SUBLANES, _LANES),
                               lambda c, i: (c, 0, 0, 0)),
        compiler_params=pltpu.CompilerParams(
            dimension_semantics=("parallel", "arbitrary"),
            vmem_limit_bytes=32 * 1024 * 1024),
        cost_estimate=cost,
    )(p2d, l2d)

    # Tiny wrapper-side combine (a handful of scalar ops; hyperparameters stay
    # traceable so no recompile per alpha/beta/gamma value).
    sums = jnp.sum(parts, axis=(0, 2, 3))        # (4,) global sums
    norm_p2, norm_l2 = sums[0], sums[1]
    sq_sum, abs_sum = sums[2], sums[3]
    # Gram identity: <p,l> = (||p||^2 + ||l||^2 - sum(p-l)^2) / 2.
    dot_pl = 0.5 * (norm_p2 + norm_l2 - sq_sum)

    eps = jnp.float32(1e-8)
    denom = (jnp.maximum(jnp.sqrt(norm_p2), eps)
             * jnp.maximum(jnp.sqrt(norm_l2), eps))
    cos_sim = dot_pl / denom

    inv_n = jnp.float32(1.0 / n)
    sim_loss = jnp.float32(1.0) - cos_sim
    mr_loss = sq_sum * inv_n
    coherence_loss = abs_sum * inv_n
    loss = alpha * sim_loss + beta * mr_loss + gamma * coherence_loss
    return jnp.asarray(loss, dtype=jnp.float32)


def _reference(p, l, alpha, beta, gamma):
    p = jnp.reshape(p, (-1,)).astype(jnp.float32)
    l = jnp.reshape(l, (-1,)).astype(jnp.float32)
    eps = 1e-8
    cos = jnp.dot(p, l) / (jnp.maximum(jnp.linalg.norm(p), eps)
                           * jnp.maximum(jnp.linalg.norm(l), eps))
    sim_loss = 1.0 - cos
    mr_loss = jnp.mean((p - l) ** 2)
    coherence_loss = jnp.mean(jnp.abs(p - l))
    return alpha * sim_loss + beta * mr_loss + gamma * coherence_loss


if __name__ == "__main__":
    alpha, beta, gamma = 0.5, 0.3, 0.2

    key = jax.random.PRNGKey(0)
    k1, k2, k3, k4 = jax.random.split(key, 4)

    # 1) Primary test: (2, 4, 16, 16) f32 -> 2048 elements (lane-aligned,
    #    single block, no mask, no split).
    predicted_scores = jax.random.normal(k1, (2, 4, 16, 16), dtype=jnp.float32)
    labels = jax.random.normal(k2, (2, 4, 16, 16), dtype=jnp.float32)
    loss = jax.block_until_ready(
        custom_loss(predicted_scores, labels, alpha, beta, gamma))
    ref = _reference(predicted_scores, labels, alpha, beta, gamma)
    assert jnp.allclose(loss, ref, rtol=1e-5, atol=1e-5), (loss, ref)

    # 2) Ragged + multi-block + 2-way split path: 4200 elements, tiny blocks
    #    force 5 blocks -> split=2, one clamped/skipped dummy block, masked
    #    ragged tail block, and the <=127-element lane pad.
    p2 = jax.random.normal(k3, (2, 3, 100, 7), dtype=jnp.float32)
    l2 = jax.random.normal(k4, (2, 3, 100, 7), dtype=jnp.float32)
    loss2 = jax.block_until_ready(
        custom_loss(p2, l2, alpha, beta, gamma, block_rows=8))
    ref2 = _reference(p2, l2, alpha, beta, gamma)
    assert jnp.allclose(loss2, ref2, rtol=1e-5, atol=1e-5), (loss2, ref2)

    # 3) bf16 streaming path (native-dtype HBM traffic, 16-row sublane tile).
    pb = predicted_scores.astype(jnp.bfloat16)
    lb = labels.astype(jnp.bfloat16)
    loss3 = jax.block_until_ready(custom_loss(pb, lb, alpha, beta, gamma))
    ref3 = _reference(pb, lb, alpha, beta, gamma)
    assert jnp.allclose(loss3, ref3, rtol=1e-5, atol=1e-5), (loss3, ref3)

    print("KERNEL_OK")
</pallas_src>

<mosaic_0001>
module attributes {stable_mosaic.version = 11 : i64} {
  func.func @_partial_sums_kernel(%arg0: i32, %arg1: i32, %arg2: memref<16x128xf32, #tpu.memory_space<vmem>>, %arg3: memref<16x128xf32, #tpu.memory_space<vmem>>, %arg4: memref<1x4x8x128xf32, #tpu.memory_space<vmem>>) attributes {dimension_semantics = [#tpu.dimension_semantics<parallel>, #tpu.dimension_semantics<arbitrary>], iteration_bounds = array<i64: 1, 1>, scalar_prefetch = 0 : i64, scratch_operands = 0 : i64, tpu.core_type = #tpu.core_type<tc>, window_params = [{transform_indices = @transform_0, window_bounds = array<i64: 16, 128>}, {transform_indices = @transform_1, window_bounds = array<i64: 16, 128>}, {transform_indices = @transform_2, window_bounds = array<i64: 1, 4, 8, 128>}]} {
    %c0_i32 = arith.constant 0 : i32
    %0 = arith.cmpi eq, %arg1, %c0_i32 : i32
    %1 = arith.extui %0 : i1 to i32
    %c0_i32_0 = arith.constant 0 : i32
    %2 = arith.cmpi ne, %1, %c0_i32_0 : i32
    scf.if %2 {
      %cst_36 = arith.constant 0.000000e+00 : f32
      %42 = vector.broadcast %cst_36 : f32 to vector<1x4x8x128xf32>
      %c0_37 = arith.constant 0 : index
      %c0_38 = arith.constant 0 : index
      %c0_39 = arith.constant 0 : index
      %c0_40 = arith.constant 0 : index
      %43 = vector.load %arg4[%c0_37, %c0_38, %c0_39, %c0_40] : memref<1x4x8x128xf32, #tpu.memory_space<vmem>>, vector<1x4x8x128xf32>
      tpu.vector_store %arg4[%c0_37, %c0_38, %c0_39, %c0_40], %42 {strides = array<i32>} : memref<1x4x8x128xf32, #tpu.memory_space<vmem>>, vector<1x4x8x128xf32>,
    } else {
    }
    %c0 = arith.constant 0 : index
    %c0_1 = arith.constant 0 : index
    %3 = vector.load %arg2[%c0, %c0_1] : memref<16x128xf32, #tpu.memory_space<vmem>>, vector<16x128xf32>
    %c0_2 = arith.constant 0 : index
    %c0_3 = arith.constant 0 : index
    %4 = vector.load %arg3[%c0_2, %c0_3] : memref<16x128xf32, #tpu.memory_space<vmem>>, vector<16x128xf32>
    %5 = arith.subf %3, %4 : vector<16x128xf32>
    %c0_4 = arith.constant 0 : index
    %c0_5 = arith.constant 0 : index
    %c0_6 = arith.constant 0 : index
    %c0_7 = arith.constant 0 : index
    %6 = vector.load %arg4[%c0_4, %c0_5, %c0_6, %c0_7] : memref<1x4x8x128xf32, #tpu.memory_space<vmem>>, vector<1x1x8x128xf32>
    %7 = vector.shape_cast %6 : vector<1x1x8x128xf32> to vector<8x128xf32>
    %8 = arith.mulf %3, %3 : vector<16x128xf32>
    %9 = vector.shape_cast %8 : vector<16x128xf32> to vector<2x8x128xf32>
    %cst = arith.constant dense<0.000000e+00> : vector<8x128xf32>
    %10 = vector.multi_reduction <add>, %9, %cst [0] : vector<2x8x128xf32> to vector<8x128xf32>
    %11 = arith.addf %7, %10 : vector<8x128xf32>
    %c0_8 = arith.constant 0 : index
    %c0_9 = arith.constant 0 : index
    %c0_10 = arith.constant 0 : index
    %c0_11 = arith.constant 0 : index
    %12 = vector.load %arg4[%c0_8, %c0_9, %c0_10, %c0_11] : memref<1x4x8x128xf32, #tpu.memory_space<vmem>>, vector<1x1x8x128xf32>
    %13 = vector.shape_cast %12 : vector<1x1x8x128xf32> to vector<8x128xf32>
    %14 = vector.shape_cast %11 : vector<8x128xf32> to vector<1x1x8x128xf32>
    tpu.vector_store %arg4[%c0_8, %c0_9, %c0_10, %c0_11], %14 {strides = array<i32>} : memref<1x4x8x128xf32, #tpu.memory_space<vmem>>, vector<1x1x8x128xf32>,
    %c0_12 = arith.constant 0 : index
    %c1 = arith.constant 1 : index
    %c0_13 = arith.constant 0 : index
    %c0_14 = arith.constant 0 : index
    %15 = vector.load %arg4[%c0_12, %c1, %c0_13, %c0_14] : memref<1x4x8x128xf32, #tpu.memory_space<vmem>>, vector<1x1x8x128xf32>
    %16 = vector.shape_cast %15 : vector<1x1x8x128xf32> to vector<8x128xf32>
    %17 = arith.mulf %4, %4 : vector<16x128xf32>
    %18 = vector.shape_cast %17 : vector<16x128xf32> to vector<2x8x128xf32>
    %cst_15 = arith.constant dense<0.000000e+00> : vector<8x128xf32>
    %19 = vector.multi_reduction <add>, %18, %cst_15 [0] : vector<2x8x128xf32> to vector<8x128xf32>
    %20 = arith.addf %16, %19 : vector<8x128xf32>
    %c0_16 = arith.constant 0 : index
    %c1_17 = arith.constant 1 : index
    %c0_18 = arith.constant 0 : index
    %c0_19 = arith.constant 0 : index
    %21 = vector.load %arg4[%c0_16, %c1_17, %c0_18, %c0_19] : memref<1x4x8x128xf32, #tpu.memory_space<vmem>>, vector<1x1x8x128xf32>
    %22 = vector.shape_cast %21 : vector<1x1x8x128xf32> to vector<8x128xf32>
    %23 = vector.shape_cast %20 : vector<8x128xf32> to vector<1x1x8x128xf32>
    tpu.vector_store %arg4[%c0_16, %c1_17, %c0_18, %c0_19], %23 {strides = array<i32>} : memref<1x4x8x128xf32, #tpu.memory_space<vmem>>, vector<1x1x8x128xf32>,
    %c0_20 = arith.constant 0 : index
    %c2 = arith.constant 2 : index
    %c0_21 = arith.constant 0 : index
    %c0_22 = arith.constant 0 : index
    %24 = vector.load %arg4[%c0_20, %c2, %c0_21, %c0_22] : memref<1x4x8x128xf32, #tpu.memory_space<vmem>>, vector<1x1x8x128xf32>
    %25 = vector.shape_cast %24 : vector<1x1x8x128xf32> to vector<8x128xf32>
    %26 = arith.mulf %5, %5 : vector<16x128xf32>
    %27 = vector.shape_cast %26 : vector<16x128xf32> to vector<2x8x128xf32>
    %cst_23 = arith.constant dense<0.000000e+00> : vector<8x128xf32>
    %28 = vector.multi_reduction <add>, %27, %cst_23 [0] : vector<2x8x128xf32> to vector<8x128xf32>
    %29 = arith.addf %25, %28 : vector<8x128xf32>
    %c0_24 = arith.constant 0 : index
    %c2_25 = arith.constant 2 : index
    %c0_26 = arith.constant 0 : index
    %c0_27 = arith.constant 0 : index
    %30 = vector.load %arg4[%c0_24, %c2_25, %c0_26, %c0_27] : memref<1x4x8x128xf32, #tpu.memory_space<vmem>>, vector<1x1x8x128xf32>
    %31 = vector.shape_cast %30 : vector<1x1x8x128xf32> to vector<8x128xf32>
    %32 = vector.shape_cast %29 : vector<8x128xf32> to vector<1x1x8x128xf32>
    tpu.vector_store %arg4[%c0_24, %c2_25, %c0_26, %c0_27], %32 {strides = array<i32>} : memref<1x4x8x128xf32, #tpu.memory_space<vmem>>, vector<1x1x8x128xf32>,
    %c0_28 = arith.constant 0 : index
    %c3 = arith.constant 3 : index
    %c0_29 = arith.constant 0 : index
    %c0_30 = arith.constant 0 : index
    %33 = vector.load %arg4[%c0_28, %c3, %c0_29, %c0_30] : memref<1x4x8x128xf32, #tpu.memory_space<vmem>>, vector<1x1x8x128xf32>
    %34 = vector.shape_cast %33 : vector<1x1x8x128xf32> to vector<8x128xf32>
    %35 = math.absf %5 : vector<16x128xf32>
    %36 = vector.shape_cast %35 : vector<16x128xf32> to vector<2x8x128xf32>
    %cst_31 = arith.constant dense<0.000000e+00> : vector<8x128xf32>
    %37 = vector.multi_reduction <add>, %36, %cst_31 [0] : vector<2x8x128xf32> to vector<8x128xf32>
    %38 = arith.addf %34, %37 : vector<8x128xf32>
    %c0_32 = arith.constant 0 : index
    %c3_33 = arith.constant 3 : index
    %c0_34 = arith.constant 0 : index
    %c0_35 = arith.constant 0 : index
    %39 = vector.load %arg4[%c0_32, %c3_33, %c0_34, %c0_35] : memref<1x4x8x128xf32, #tpu.memory_space<vmem>>, vector<1x1x8x128xf32>
    %40 = vector.shape_cast %39 : vector<1x1x8x128xf32> to vector<8x128xf32>
    %41 = vector.shape_cast %38 : vector<8x128xf32> to vector<1x1x8x128xf32>
    tpu.vector_store %arg4[%c0_32, %c3_33, %c0_34, %c0_35], %41 {strides = array<i32>} : memref<1x4x8x128xf32, #tpu.memory_space<vmem>>, vector<1x1x8x128xf32>,
    return
  }
  func.func @transform_0(%arg0: i32, %arg1: i32) -> (i32, i32) {
    %c1_i32 = arith.constant 1 : i32
    %0 = arith.muli %arg0, %c1_i32 : i32
    %1 = arith.addi %0, %arg1 : i32
    %c0_i32 = arith.constant 0 : i32
    %c0_i32_0 = arith.constant 0 : i32
    return %1, %c0_i32 : i32, i32
  }
  func.func @transform_1(%arg0: i32, %arg1: i32) -> (i32, i32) {
    %c1_i32 = arith.constant 1 : i32
    %0 = arith.muli %arg0, %c1_i32 : i32
    %1 = arith.addi %0, %arg1 : i32
    %c0_i32 = arith.constant 0 : i32
    %c0_i32_0 = arith.constant 0 : i32
    return %1, %c0_i32 : i32, i32
  }
  func.func @transform_2(%arg0: i32, %arg1: i32) -> (i32, i32, i32, i32) {
    %c0_i32 = arith.constant 0 : i32
    %c0_i32_0 = arith.constant 0 : i32
    %c0_i32_1 = arith.constant 0 : i32
    %c0_i32_2 = arith.constant 0 : i32
    return %arg0, %c0_i32, %c0_i32_0, %c0_i32_1 : i32, i32, i32, i32
  }
}

</mosaic_0001>

<llo_original>
// kernel: tpu_custom_call.1
$region0: #{tpu_custom_call.1}
  #allocation0 [shape = 'u32[]', space=smem, size = 0x4, offset = 0x4, fixed_abs, tag = 'smem constant byte address 0x4 - core index']
  #allocation1 [shape = 'u32[144,128]{1,0:T(1,128)}', space=vmem, size = 0x12000, scoped, tag = 'internal scratch']
  %s0 = inlined_call_operand.hbm [shape: f32[16,128], index: 0, kind: input, shape index: {}]
  %s1 = inlined_call_operand.hbm [shape: f32[16,128], index: 1, kind: input, shape index: {}]
  %s2 = inlined_call_operand.hbm [shape: f32[1,4,8,128], index: 2, kind: output, shape index: {}]
  %s3 = sld [smem:[#allocation0]]
  $region30: #{tpu_custom_call.1} parent=0
    _
  %s5 = ssub.s32 1, %s3
  %s6 = scalar_select 0, %s5, %s3
  $region1: #{tpu_custom_call.1} parent=0
    #allocation2 [shape = 'u8[8192]{0}', space=vmem, size = 0x2000, scoped, tag = 'input window, operand 0, single buffered']
    #allocation3 [shape = 's32[1]{0}', space=sflag, size = 0x4, scoped, tag = 'scoped memory for tpu_custom_call.1']
    #allocation4 [shape = 's32[1]{0}', space=sflag, size = 0x4, scoped, tag = 'scoped memory for tpu_custom_call.1']
    #allocation5 [shape = 'u8[8192]{0}', space=vmem, size = 0x2000, scoped, tag = 'input window, operand 1, single buffered']
    #allocation6 [shape = 's32[1]{0}', space=sflag, size = 0x4, scoped, tag = 'scoped memory for tpu_custom_call.1']
    #allocation7 [shape = 'u8[16384]{0}', space=vmem, size = 0x4000, scoped, tag = 'output window, operand 0, single buffered']
    %7 = vsyncpa [#allocation3], 0
    %8 = vsyncpa [#allocation6], 0
    %9 = vsyncpa [#allocation4], 0
    // Predicated region
    $region2: #{tpu_custom_call.1} parent=1 // pred_check
      _
    $region3: #{tpu_custom_call.1} parent=1 // pred_check_branch
      %11 = sbr.rel (0) target = $region5
    $region4: #{tpu_custom_call.1} parent=1 // pred_region
      %s12 = sadd.s32 0, 0
      %s13 = smul.u32 2, %s12
      %s15 = ssub.s32 256, 256
      %16 = vsyncadd [#allocation3], %s15
      %s17 = smul.addr %s13, 128
      %s18 = scalar_lea.hbm %s0, %s17
      %s19 = sshll.u32 [#allocation2], 4
      %s20 = int_to_ptr.vmem [resolvable:$true] %s19
      %25 = dma.hbm_to_vmem [thread:$0]  %s18, 256, %s20, [#allocation3], 128, 128, 8
    $region5: #{tpu_custom_call.1} parent=1 // pred_fallthru
      _
    // Predicated region
    $region6: #{tpu_custom_call.1} parent=1 // pred_check
      _
    $region7: #{tpu_custom_call.1} parent=1 // pred_check_branch
      %27 = sbr.rel (0) target = $region9
    $region8: #{tpu_custom_call.1} parent=1 // pred_region
      %s28 = sadd.s32 0, 0
      %s29 = smul.u32 2, %s28
      %s31 = ssub.s32 256, 256
      %32 = vsyncadd [#allocation6], %s31
      %s33 = smul.addr %s29, 128
      %s34 = scalar_lea.hbm %s1, %s33
      %s35 = sshll.u32 [#allocation5], 4
      %s36 = int_to_ptr.vmem [resolvable:$true] %s35
      %41 = dma.hbm_to_vmem [thread:$0]  %s34, 256, %s36, [#allocation6], 128, 128, 8
    $region9: #{tpu_custom_call.1} parent=1 // pred_fallthru
      _
    // Predicated region
    $region10: #{tpu_custom_call.1} parent=1 // pred_check
      _
    $region11: #{tpu_custom_call.1} parent=1 // pred_check_branch
      %43 = sbr.rel (0) target = $region13
    $region12: #{tpu_custom_call.1} parent=1 // pred_region
      %44 = dma.done [#allocation3], 256
    $region13: #{tpu_custom_call.1} parent=1 // pred_fallthru
      _
    // Predicated region
    $region14: #{tpu_custom_call.1} parent=1 // pred_check
      _
    $region15: #{tpu_custom_call.1} parent=1 // pred_check_branch
      %46 = sbr.rel (0) target = $region17
    $region16: #{tpu_custom_call.1} parent=1 // pred_region
      %47 = dma.done [#allocation6], 256
    $region17: #{tpu_custom_call.1} parent=1 // pred_fallthru
      _
    %s48 = sadd.s32 0, 0
    %s49 = smul.u32 2, %s48
    %s50 = sadd.s32 0, 0
    %s51 = smul.u32 2, %s50
    %p52 = scmp.eq.s32.totalorder 0, 0
    // Predicated region
    $region18: #{tpu_custom_call.1} parent=1 // pred_check
      %p53 = pneg %p52
    $region19: #{tpu_custom_call.1} parent=1 // pred_check_branch
      %55 = sbr.rel (%p53) target = $region21
    $region20: #{tpu_custom_call.1} parent=1 // pred_region
      %56 = vst [vmem:[#allocation7] sm:$0xff] 0.0
      %57 = vst [vmem:[#allocation7 + $0x8] sm:$0xff] 0.0
      %58 = vst [vmem:[#allocation7 + $0x10] sm:$0xff] 0.0
      %59 = vst [vmem:[#allocation7 + $0x18] sm:$0xff] 0.0
    $region21: #{tpu_custom_call.1} parent=1 // pred_fallthru
      _
    %v60 = vld [vmem:[#allocation2] sm:$0xff]
    %v61 = vld [vmem:[#allocation2 + $0x8] sm:$0xff]
    %v62 = vld [vmem:[#allocation5] sm:$0xff]
    %v63 = vld [vmem:[#allocation5 + $0x8] sm:$0xff]
    %v64 = vsub.f32 %v60, %v62
    %v65 = vsub.f32 %v61, %v63
    %v66 = vld [vmem:[#allocation7] sm:$0xff]
    %v67 = vmul.f32 %v60, %v60
    %v68 = vmul.f32 %v61, %v61
    %v69 = vadd.f32 %v67, %v68
    %v70 = vadd.f32 %v66, %v69
    %71 = vst [vmem:[#allocation7] sm:$0xff] %v70
    %s72 = scalar_lea.vmem [#allocation7], 8
    %v73 = vld [vmem:[%s72] sm:$0xff]
    %v74 = vmul.f32 %v62, %v62
    %v75 = vmul.f32 %v63, %v63
    %v76 = vadd.f32 %v74, %v75
    %v77 = vadd.f32 %v73, %v76
    %78 = vst [vmem:[%s72] sm:$0xff] %v77
    %s79 = scalar_lea.vmem [#allocation7], 16
    %v80 = vld [vmem:[%s79] sm:$0xff]
    %v81 = vmul.f32 %v64, %v64
    %v82 = vmul.f32 %v65, %v65
    %v83 = vadd.f32 %v81, %v82
    %v84 = vadd.f32 %v80, %v83
    %85 = vst [vmem:[%s79] sm:$0xff] %v84
    %s86 = scalar_lea.vmem [#allocation7], 24
    %v87 = vld [vmem:[%s86] sm:$0xff]
    %v88 = vand.u32 2147483647, %v64
    %v89 = vand.u32 2147483647, %v65
    %v90 = vadd.f32 %v88, %v89
    %v91 = vadd.f32 %v87, %v90
    %92 = vst [vmem:[%s86] sm:$0xff] %v91
    // Predicated region
    $region22: #{tpu_custom_call.1} parent=1 // pred_check
      _
    $region23: #{tpu_custom_call.1} parent=1 // pred_check_branch
      %94 = sbr.rel (0) target = $region25
    $region24: #{tpu_custom_call.1} parent=1 // pred_region
      %s96 = ssub.s32 512, 512
      %97 = vsyncadd [#allocation4], %s96
      %s98 = sshll.u32 [#allocation7], 4
      %s99 = int_to_ptr.vmem [resolvable:$true] %s98
      %104 = dma.vmem_to_hbm [thread:$0]  %s99, 512, %s2, [#allocation4], 128, 128, 8
    $region25: #{tpu_custom_call.1} parent=1 // pred_fallthru
      _
    // Predicated region
    $region26: #{tpu_custom_call.1} parent=1 // pred_check
      _
    $region27: #{tpu_custom_call.1} parent=1 // pred_check_branch
      %106 = sbr.rel (0) target = $region29
    $region28: #{tpu_custom_call.1} parent=1 // pred_region
      %107 = dma.done [#allocation4], 512
    $region29: #{tpu_custom_call.1} parent=1 // pred_fallthru
      _
    %108 = vsyncpa [#allocation3], 1
    %109 = vsyncpa [#allocation6], 1
    %110 = vsyncpa [#allocation4], 1

</llo_original>
